<compile_context>
chip_gen: v7x
topology: tpu7x:2x2x1
jax: 0.10.0
libtpu: 0.0.40
codegen_flags: <defaults>
</compile_context>

<pallas_src>
import functools
import math

import jax
import jax.numpy as jnp
from jax.experimental import pallas as pl
from jax.experimental.pallas import tpu as pltpu


def _mha_fused_kernel(x_ref, wqkv_ref, b_ref, o_ref, *, seq_len, n_head):
    # x_ref:     (rows, E)        rows = NB * S  (NB = batches handled this step)
    # wqkv_ref:  (E, 3*H*E)       columns: [q*1/sqrt(E) heads | k heads | Wv@Wproj heads]
    # b_ref:     (1, E)           projection bias (f32)
    # o_ref:     (rows, E)
    S, H = seq_len, n_head
    E = x_ref.shape[-1]
    NB = x_ref.shape[0] // S
    HE = H * E

    cdt = wqkv_ref.dtype  # MXU operand dtype (f32 or bf16); accumulation is always f32

    x = x_ref[...].astype(cdt)
    # One wide MXU matmul: q/k/v' for every head and every row at once.
    # q columns already carry the 1/sqrt(E) softmax scale; v' columns already
    # carry the output projection (Wv[h] @ Wproj[h*E:(h+1)*E]).
    qkv = jnp.dot(x, wqkv_ref[...], preferred_element_type=jnp.float32)  # (rows, 3*HE) f32

    # Causal mask, hoisted once (shared by all batches/heads).
    row = jax.lax.broadcasted_iota(jnp.int32, (S, S), 0)
    col = jax.lax.broadcasted_iota(jnp.int32, (S, S), 1)
    causal = col <= row
    neg_big = jnp.float32(-1e30)  # large finite negative: robust vs -inf if masking changes

    bias_tile = jnp.broadcast_to(b_ref[...], (S, E))  # hoisted (broadcast not CSE'd in loops)

    # NB and H are tiny here, so a trace-time unroll is fine.
    # TODO(synk): replace with lax.fori_loop / flash KV tiling at production S.
    for b in range(NB):
        r0 = b * S
        acc = bias_tile  # start the projected-output accumulator from the bias
        for h in range(H):
            q = qkv[r0:r0 + S, h * E:(h + 1) * E]                       # (S, E) pre-scaled
            k = qkv[r0:r0 + S, HE + h * E:HE + (h + 1) * E]             # (S, E)
            v = qkv[r0:r0 + S, 2 * HE + h * E:2 * HE + (h + 1) * E]     # (S, E) pre-projected

            # q @ k^T by contracting last dims — no explicit XLU transpose of k.
            s = jax.lax.dot_general(
                q, k, dimension_numbers=(((1,), (1,)), ((), ())),
                preferred_element_type=jnp.float32)                     # (S, S)
            s = jnp.where(causal, s, neg_big)

            # softmax over keys (diagonal always unmasked -> finite row max).
            m = jnp.max(s, axis=-1, keepdims=True)
            p = jnp.exp(s - m)
            denom = jnp.sum(p, axis=-1, keepdims=True)
            # approx=False for exact parity with the reference; switch to
            # approx=True (EUP slot, off the VALU) at production sizes.
            attn = p * pl.reciprocal(denom, approx=False)

            # attn @ v' directly accumulates the *projected* output: the per-head
            # concat and the (S,HE)@(HE,E) projection matmul no longer exist.
            acc = acc + jnp.dot(attn.astype(cdt), v.astype(cdt),
                                preferred_element_type=jnp.float32)
        # Note: E=32 lanes -> masked partial stores; lane-dense only when E >= 128.
        o_ref[r0:r0 + S, :] = acc


def prepare_mha_params(wq, wk, wv, w_proj, b_proj, *, matmul_dtype=jnp.float32):
    """Host-side parameter prep, done ONCE at init (not in the forward path).

    wq/wk/wv: (H, E, E); w_proj: (H*E, E); b_proj: (E,).
    Returns (w_qkv, b2d) where
      w_qkv: (E, 3*H*E) = [ stack(Wq / sqrt(E)) | stack(Wk) | stack(Wv @ Wproj_h) ]
      b2d:   (1, E) f32 projection bias.
    """
    H, E, _ = wq.shape
    HE = H * E
    hp = jax.lax.Precision.HIGHEST

    wq_scaled = wq * jnp.float32(1.0 / math.sqrt(E))            # fold softmax scale
    # fold output projection into v: v'_h = Wv[h] @ Wproj[h*E:(h+1)*E]
    wv_proj = jnp.einsum('hij,hjk->hik', wv, w_proj.reshape(H, E, E), precision=hp)

    def stack(w):  # (H, E, E) -> (E, H*E); head h occupies columns [h*E, (h+1)*E)
        return jnp.transpose(w, (1, 0, 2)).reshape(E, HE)

    w_qkv = jnp.concatenate([stack(wq_scaled), stack(wk), stack(wv_proj)], axis=1)
    return w_qkv.astype(matmul_dtype), b_proj.reshape(1, E).astype(jnp.float32)


def _default_fold_batch() -> bool:
    """Single-TC chips (v5e/v6e): fold the batch into one grid step.
    Multi-TC chips (v7x): keep grid=(B,) 'parallel' so both cores stay busy."""
    try:
        kind = jax.devices()[0].device_kind.lower()
    except Exception:
        return True
    return not any(tag in kind for tag in ("v7", "7x"))


def multi_head_attention(x, w_qkv, b2d, *, n_head, fold_batch=None):
    """x: (B, S, E); w_qkv/b2d from prepare_mha_params. Returns (B, S, E) f32."""
    B, S, E = x.shape
    HE = n_head * E
    assert w_qkv.shape == (E, 3 * HE)

    if fold_batch is None:
        fold_batch = _default_fold_batch()
    steps = 1 if fold_batch else B
    rows = (B // steps) * S  # rows of x handled per grid step

    x2d = x.reshape(B * S, E)  # metadata-only host reshape; lane-dense (last dim kept)

    kernel = functools.partial(_mha_fused_kernel, seq_len=S, n_head=n_head)
    out2d = pl.pallas_call(
        kernel,
        out_shape=jax.ShapeDtypeStruct((B * S, E), jnp.float32),
        grid_spec=pltpu.PrefetchScalarGridSpec(
            num_scalar_prefetch=0,
            grid=(steps,),
            in_specs=[
                pl.BlockSpec((rows, E), lambda i: (i, 0)),
                pl.BlockSpec((E, 3 * HE), lambda i: (0, 0)),
                pl.BlockSpec((1, E), lambda i: (0, 0)),
            ],
            out_specs=pl.BlockSpec((rows, E), lambda i: (i, 0)),
        ),
        compiler_params=pltpu.CompilerParams(
            dimension_semantics=("parallel",)),
    )(x2d, w_qkv, b2d)
    return out2d.reshape(B, S, E)


def reference_mha(x, wq, wk, wv, w_proj, b_proj):
    """Pure-JAX reference mirroring the PyTorch forward exactly (full-f32 matmuls)."""
    B, S, E = x.shape
    H = wq.shape[0]
    hp = jax.lax.Precision.HIGHEST
    mask = jnp.triu(jnp.ones((S, S), dtype=jnp.float32), k=1)
    add_mask = jnp.where(mask == 1.0, jnp.float32(-jnp.inf), jnp.float32(0.0))
    outs = []
    for h in range(H):
        q = jnp.matmul(x, wq[h], precision=hp)
        k = jnp.matmul(x, wk[h], precision=hp)
        v = jnp.matmul(x, wv[h], precision=hp)
        s = jnp.matmul(q, jnp.swapaxes(k, -2, -1), precision=hp) / math.sqrt(E)
        s = s + add_mask
        p = jax.nn.softmax(s, axis=-1)
        outs.append(jnp.matmul(p, v, precision=hp))
    concat = jnp.concatenate(outs, axis=-1)
    return jnp.matmul(concat, w_proj, precision=hp) + b_proj


if __name__ == "__main__":
    # Small shapes consistent with the module: batch=2, seq=8, n_embd=32, n_head=4
    B, S, E, H = 2, 8, 32, 4
    key = jax.random.PRNGKey(0)
    kx, kq, kk, kv, kw, kb = jax.random.split(key, 6)

    x = jax.random.normal(kx, (B, S, E), dtype=jnp.float32)
    # torch.randn-style init for per-head weights
    wq = jax.random.normal(kq, (H, E, E), dtype=jnp.float32)
    wk = jax.random.normal(kk, (H, E, E), dtype=jnp.float32)
    wv = jax.random.normal(kv, (H, E, E), dtype=jnp.float32)
    # nn.Linear(H*E, E) default init: uniform(-1/sqrt(fan_in), 1/sqrt(fan_in))
    bound = 1.0 / math.sqrt(H * E)
    w_proj = jax.random.uniform(kw, (H * E, E), minval=-bound, maxval=bound,
                                dtype=jnp.float32)
    b_proj = jax.random.uniform(kb, (E,), minval=-bound, maxval=bound,
                                dtype=jnp.float32)

    # Parameter prep happens ONCE here (hoisted out of the per-call path).
    w_qkv, b2d = prepare_mha_params(wq, wk, wv, w_proj, b_proj)

    # Validate BOTH per-generation grid layouts against the f32 reference.
    out_split = multi_head_attention(x, w_qkv, b2d, n_head=H, fold_batch=False)  # grid=(B,)  v7x layout
    out_fold = multi_head_attention(x, w_qkv, b2d, n_head=H, fold_batch=True)    # grid=(1,)  v5e/v6e layout
    out_split, out_fold = jax.block_until_ready((out_split, out_fold))

    ref = reference_mha(x, wq, wk, wv, w_proj, b_proj)
    for out in (out_split, out_fold):
        assert out.shape == (B, S, E)
        assert jnp.allclose(out, ref, atol=5e-3, rtol=5e-3), "mismatch vs reference"

    # bf16 MXU-operand path (production matmul lever; f32 accumulation kept).
    # Only sanity-checked: unscaled N(0,1) test weights give huge logits, so bf16
    # scores are not a meaningful parity target at these toy shapes.
    w_qkv_bf16, b2d_bf16 = prepare_mha_params(wq, wk, wv, w_proj, b_proj,
                                              matmul_dtype=jnp.bfloat16)
    out_bf16 = jax.block_until_ready(
        multi_head_attention(x, w_qkv_bf16, b2d_bf16, n_head=H))
    assert out_bf16.shape == (B, S, E)
    assert bool(jnp.all(jnp.isfinite(out_bf16)))

    print("KERNEL_OK")
</pallas_src>

<mosaic_0001>
module attributes {stable_mosaic.version = 11 : i64} {
  func.func @_mha_fused_kernel(%arg0: i32, %arg1: memref<8x32xf32, #tpu.memory_space<vmem>>, %arg2: memref<32x384xf32, #tpu.memory_space<vmem>>, %arg3: memref<1x32xf32, #tpu.memory_space<vmem>>, %arg4: memref<8x32xf32, #tpu.memory_space<vmem>>) attributes {dimension_semantics = [#tpu.dimension_semantics<parallel>], iteration_bounds = array<i64: 2>, scalar_prefetch = 0 : i64, scratch_operands = 0 : i64, tpu.core_type = #tpu.core_type<tc>, window_params = [{transform_indices = @transform_0, window_bounds = array<i64: 8, 32>}, {pipeline_mode = #tpu.pipeline_mode<synchronous>, transform_indices = @transform_1, window_bounds = array<i64: 32, 384>}, {pipeline_mode = #tpu.pipeline_mode<synchronous>, transform_indices = @transform_2, window_bounds = array<i64: 1, 32>}, {transform_indices = @transform_3, window_bounds = array<i64: 8, 32>}]} {
    %c0 = arith.constant 0 : index
    %c0_0 = arith.constant 0 : index
    %0 = vector.load %arg1[%c0, %c0_0] : memref<8x32xf32, #tpu.memory_space<vmem>>, vector<8x32xf32>
    %c0_1 = arith.constant 0 : index
    %c0_2 = arith.constant 0 : index
    %1 = vector.load %arg2[%c0_1, %c0_2] : memref<32x384xf32, #tpu.memory_space<vmem>>, vector<32x384xf32>
    %cst = arith.constant dense<0.000000e+00> : vector<8x384xf32>
    %2 = tpu.matmul %0, %1, %cst {dimension_numbers = #tpu.dot_dimension_numbers<[1], [0], [0], [1], [0, 0, 1, 1], [], []>} : vector<8x32xf32>, vector<32x384xf32>, vector<8x384xf32> -> vector<8x384xf32>
    %3 = tpu.iota {dimensions = array<i32: 0>} : vector<8x8xi32>
    %4 = tpu.iota {dimensions = array<i32: 1>} : vector<8x8xi32>
    %5 = arith.cmpi sle, %4, %3 : vector<8x8xi32>
    %c0_3 = arith.constant 0 : index
    %c0_4 = arith.constant 0 : index
    %6 = vector.load %arg3[%c0_3, %c0_4] : memref<1x32xf32, #tpu.memory_space<vmem>>, vector<1x32xf32>
    %7 = vector.shape_cast %6 : vector<1x32xf32> to vector<1x32xf32>
    %8 = vector.broadcast %7 : vector<1x32xf32> to vector<8x32xf32>
    %9 = vector.extract_strided_slice %2 {offsets = [0, 0], sizes = [8, 32], strides = [1, 1]} : vector<8x384xf32> to vector<8x32xf32>
    %10 = vector.extract_strided_slice %2 {offsets = [0, 128], sizes = [8, 32], strides = [1, 1]} : vector<8x384xf32> to vector<8x32xf32>
    %11 = vector.extract_strided_slice %2 {offsets = [0, 256], sizes = [8, 32], strides = [1, 1]} : vector<8x384xf32> to vector<8x32xf32>
    %cst_5 = arith.constant dense<0.000000e+00> : vector<8x8xf32>
    %12 = tpu.matmul %9, %10, %cst_5 {dimension_numbers = #tpu.dot_dimension_numbers<[1], [1], [0], [0], [0, 0, 1, 0], [], []>} : vector<8x32xf32>, vector<8x32xf32>, vector<8x8xf32> -> vector<8x8xf32>
    %cst_6 = arith.constant -1.000000e+30 : f32
    %13 = vector.broadcast %cst_6 : f32 to vector<8x8xf32>
    %14 = arith.select %5, %12, %13 : vector<8x8xi1>, vector<8x8xf32>
    %cst_7 = arith.constant dense<0xFF800000> : vector<8xf32>
    %15 = vector.multi_reduction <maximumf>, %14, %cst_7 [1] : vector<8x8xf32> to vector<8xf32>
    %16 = vector.shape_cast %15 : vector<8xf32> to vector<8x1xf32>
    %17 = vector.broadcast %16 : vector<8x1xf32> to vector<8x8xf32>
    %18 = arith.subf %14, %17 : vector<8x8xf32>
    %19 = math.exp %18 : vector<8x8xf32>
    %cst_8 = arith.constant dense<0.000000e+00> : vector<8xf32>
    %20 = vector.multi_reduction <add>, %19, %cst_8 [1] : vector<8x8xf32> to vector<8xf32>
    %21 = vector.shape_cast %20 : vector<8xf32> to vector<8x1xf32>
    %22 = tpu.reciprocal %21 : vector<8x1xf32> -> vector<8x1xf32>
    %23 = vector.broadcast %22 : vector<8x1xf32> to vector<8x8xf32>
    %24 = arith.mulf %19, %23 : vector<8x8xf32>
    %cst_9 = arith.constant dense<0.000000e+00> : vector<8x32xf32>
    %25 = tpu.matmul %24, %11, %cst_9 {dimension_numbers = #tpu.dot_dimension_numbers<[1], [0], [0], [1], [0, 0, 1, 1], [], []>} : vector<8x8xf32>, vector<8x32xf32>, vector<8x32xf32> -> vector<8x32xf32>
    %26 = arith.addf %8, %25 : vector<8x32xf32>
    %27 = vector.extract_strided_slice %2 {offsets = [0, 32], sizes = [8, 32], strides = [1, 1]} : vector<8x384xf32> to vector<8x32xf32>
    %28 = vector.extract_strided_slice %2 {offsets = [0, 160], sizes = [8, 32], strides = [1, 1]} : vector<8x384xf32> to vector<8x32xf32>
    %29 = vector.extract_strided_slice %2 {offsets = [0, 288], sizes = [8, 32], strides = [1, 1]} : vector<8x384xf32> to vector<8x32xf32>
    %cst_10 = arith.constant dense<0.000000e+00> : vector<8x8xf32>
    %30 = tpu.matmul %27, %28, %cst_10 {dimension_numbers = #tpu.dot_dimension_numbers<[1], [1], [0], [0], [0, 0, 1, 0], [], []>} : vector<8x32xf32>, vector<8x32xf32>, vector<8x8xf32> -> vector<8x8xf32>
    %cst_11 = arith.constant -1.000000e+30 : f32
    %31 = vector.broadcast %cst_11 : f32 to vector<8x8xf32>
    %32 = arith.select %5, %30, %31 : vector<8x8xi1>, vector<8x8xf32>
    %cst_12 = arith.constant dense<0xFF800000> : vector<8xf32>
    %33 = vector.multi_reduction <maximumf>, %32, %cst_12 [1] : vector<8x8xf32> to vector<8xf32>
    %34 = vector.shape_cast %33 : vector<8xf32> to vector<8x1xf32>
    %35 = vector.broadcast %34 : vector<8x1xf32> to vector<8x8xf32>
    %36 = arith.subf %32, %35 : vector<8x8xf32>
    %37 = math.exp %36 : vector<8x8xf32>
    %cst_13 = arith.constant dense<0.000000e+00> : vector<8xf32>
    %38 = vector.multi_reduction <add>, %37, %cst_13 [1] : vector<8x8xf32> to vector<8xf32>
    %39 = vector.shape_cast %38 : vector<8xf32> to vector<8x1xf32>
    %40 = tpu.reciprocal %39 : vector<8x1xf32> -> vector<8x1xf32>
    %41 = vector.broadcast %40 : vector<8x1xf32> to vector<8x8xf32>
    %42 = arith.mulf %37, %41 : vector<8x8xf32>
    %cst_14 = arith.constant dense<0.000000e+00> : vector<8x32xf32>
    %43 = tpu.matmul %42, %29, %cst_14 {dimension_numbers = #tpu.dot_dimension_numbers<[1], [0], [0], [1], [0, 0, 1, 1], [], []>} : vector<8x8xf32>, vector<8x32xf32>, vector<8x32xf32> -> vector<8x32xf32>
    %44 = arith.addf %26, %43 : vector<8x32xf32>
    %45 = vector.extract_strided_slice %2 {offsets = [0, 64], sizes = [8, 32], strides = [1, 1]} : vector<8x384xf32> to vector<8x32xf32>
    %46 = vector.extract_strided_slice %2 {offsets = [0, 192], sizes = [8, 32], strides = [1, 1]} : vector<8x384xf32> to vector<8x32xf32>
    %47 = vector.extract_strided_slice %2 {offsets = [0, 320], sizes = [8, 32], strides = [1, 1]} : vector<8x384xf32> to vector<8x32xf32>
    %cst_15 = arith.constant dense<0.000000e+00> : vector<8x8xf32>
    %48 = tpu.matmul %45, %46, %cst_15 {dimension_numbers = #tpu.dot_dimension_numbers<[1], [1], [0], [0], [0, 0, 1, 0], [], []>} : vector<8x32xf32>, vector<8x32xf32>, vector<8x8xf32> -> vector<8x8xf32>
    %cst_16 = arith.constant -1.000000e+30 : f32
    %49 = vector.broadcast %cst_16 : f32 to vector<8x8xf32>
    %50 = arith.select %5, %48, %49 : vector<8x8xi1>, vector<8x8xf32>
    %cst_17 = arith.constant dense<0xFF800000> : vector<8xf32>
    %51 = vector.multi_reduction <maximumf>, %50, %cst_17 [1] : vector<8x8xf32> to vector<8xf32>
    %52 = vector.shape_cast %51 : vector<8xf32> to vector<8x1xf32>
    %53 = vector.broadcast %52 : vector<8x1xf32> to vector<8x8xf32>
    %54 = arith.subf %50, %53 : vector<8x8xf32>
    %55 = math.exp %54 : vector<8x8xf32>
    %cst_18 = arith.constant dense<0.000000e+00> : vector<8xf32>
    %56 = vector.multi_reduction <add>, %55, %cst_18 [1] : vector<8x8xf32> to vector<8xf32>
    %57 = vector.shape_cast %56 : vector<8xf32> to vector<8x1xf32>
    %58 = tpu.reciprocal %57 : vector<8x1xf32> -> vector<8x1xf32>
    %59 = vector.broadcast %58 : vector<8x1xf32> to vector<8x8xf32>
    %60 = arith.mulf %55, %59 : vector<8x8xf32>
    %cst_19 = arith.constant dense<0.000000e+00> : vector<8x32xf32>
    %61 = tpu.matmul %60, %47, %cst_19 {dimension_numbers = #tpu.dot_dimension_numbers<[1], [0], [0], [1], [0, 0, 1, 1], [], []>} : vector<8x8xf32>, vector<8x32xf32>, vector<8x32xf32> -> vector<8x32xf32>
    %62 = arith.addf %44, %61 : vector<8x32xf32>
    %63 = vector.extract_strided_slice %2 {offsets = [0, 96], sizes = [8, 32], strides = [1, 1]} : vector<8x384xf32> to vector<8x32xf32>
    %64 = vector.extract_strided_slice %2 {offsets = [0, 224], sizes = [8, 32], strides = [1, 1]} : vector<8x384xf32> to vector<8x32xf32>
    %65 = vector.extract_strided_slice %2 {offsets = [0, 352], sizes = [8, 32], strides = [1, 1]} : vector<8x384xf32> to vector<8x32xf32>
    %cst_20 = arith.constant dense<0.000000e+00> : vector<8x8xf32>
    %66 = tpu.matmul %63, %64, %cst_20 {dimension_numbers = #tpu.dot_dimension_numbers<[1], [1], [0], [0], [0, 0, 1, 0], [], []>} : vector<8x32xf32>, vector<8x32xf32>, vector<8x8xf32> -> vector<8x8xf32>
    %cst_21 = arith.constant -1.000000e+30 : f32
    %67 = vector.broadcast %cst_21 : f32 to vector<8x8xf32>
    %68 = arith.select %5, %66, %67 : vector<8x8xi1>, vector<8x8xf32>
    %cst_22 = arith.constant dense<0xFF800000> : vector<8xf32>
    %69 = vector.multi_reduction <maximumf>, %68, %cst_22 [1] : vector<8x8xf32> to vector<8xf32>
    %70 = vector.shape_cast %69 : vector<8xf32> to vector<8x1xf32>
    %71 = vector.broadcast %70 : vector<8x1xf32> to vector<8x8xf32>
    %72 = arith.subf %68, %71 : vector<8x8xf32>
    %73 = math.exp %72 : vector<8x8xf32>
    %cst_23 = arith.constant dense<0.000000e+00> : vector<8xf32>
    %74 = vector.multi_reduction <add>, %73, %cst_23 [1] : vector<8x8xf32> to vector<8xf32>
    %75 = vector.shape_cast %74 : vector<8xf32> to vector<8x1xf32>
    %76 = tpu.reciprocal %75 : vector<8x1xf32> -> vector<8x1xf32>
    %77 = vector.broadcast %76 : vector<8x1xf32> to vector<8x8xf32>
    %78 = arith.mulf %73, %77 : vector<8x8xf32>
    %cst_24 = arith.constant dense<0.000000e+00> : vector<8x32xf32>
    %79 = tpu.matmul %78, %65, %cst_24 {dimension_numbers = #tpu.dot_dimension_numbers<[1], [0], [0], [1], [0, 0, 1, 1], [], []>} : vector<8x8xf32>, vector<8x32xf32>, vector<8x32xf32> -> vector<8x32xf32>
    %80 = arith.addf %62, %79 : vector<8x32xf32>
    %c0_25 = arith.constant 0 : index
    %c0_26 = arith.constant 0 : index
    %81 = vector.load %arg4[%c0_25, %c0_26] : memref<8x32xf32, #tpu.memory_space<vmem>>, vector<8x32xf32>
    tpu.vector_store %arg4[%c0_25, %c0_26], %80 {strides = array<i32>} : memref<8x32xf32, #tpu.memory_space<vmem>>, vector<8x32xf32>,
    return
  }
  func.func @transform_0(%arg0: i32) -> (i32, i32) {
    %c0_i32 = arith.constant 0 : i32
    %c0_i32_0 = arith.constant 0 : i32
    return %arg0, %c0_i32 : i32, i32
  }
  func.func @transform_1(%arg0: i32) -> (i32, i32) {
    %c0_i32 = arith.constant 0 : i32
    %c0_i32_0 = arith.constant 0 : i32
    %c0_i32_1 = arith.constant 0 : i32
    return %c0_i32, %c0_i32_0 : i32, i32
  }
  func.func @transform_2(%arg0: i32) -> (i32, i32) {
    %c0_i32 = arith.constant 0 : i32
    %c0_i32_0 = arith.constant 0 : i32
    %c0_i32_1 = arith.constant 0 : i32
    return %c0_i32, %c0_i32_0 : i32, i32
  }
  func.func @transform_3(%arg0: i32) -> (i32, i32) {
    %c0_i32 = arith.constant 0 : i32
    %c0_i32_0 = arith.constant 0 : i32
    return %arg0, %c0_i32 : i32, i32
  }
}

</mosaic_0001>

<llo_original>
// kernel: tpu_custom_call.1
$region0: #{tpu_custom_call.1}
  #allocation0 [shape = 'u32[]', space=smem, size = 0x4, offset = 0x4, fixed_abs, tag = 'smem constant byte address 0x4 - core index']
  #allocation1 [shape = 'u32[144,128]{1,0:T(1,128)}', space=vmem, size = 0x12000, scoped, tag = 'internal scratch']
  %s0 = inlined_call_operand.hbm [shape: f32[16,32], index: 0, kind: input, shape index: {}]
  %s1 = inlined_call_operand.hbm [shape: f32[32,384], index: 1, kind: input, shape index: {}]
  %s2 = inlined_call_operand.vmem [shape: f32[1,32], index: 2, kind: input, shape index: {}]
  %s3 = inlined_call_operand.hbm [shape: f32[16,32], index: 3, kind: output, shape index: {}]
  %s4 = sld [smem:[#allocation0]]
  $region53: #{tpu_custom_call.1} parent=0
    _
  %s6 = ssub.s32 1, %s4
  %s7 = scalar_select 0, %s6, %s4
  $region1: #{tpu_custom_call.1} parent=0
    #allocation2 [shape = 'u8[8192]{0}', space=vmem, size = 0x2000, scoped, tag = 'input window, operand 0']
    #allocation3 [shape = 's32[2]{0}', space=sflag, size = 0x8, scoped, tag = 'scoped memory for tpu_custom_call.1']
    #allocation4 [shape = 's32[2]{0}', space=sflag, size = 0x8, scoped, tag = 'scoped memory for tpu_custom_call.1']
    #allocation5 [shape = 'u8[49152]{0}', space=vmem, size = 0xc000, scoped, tag = 'input window, operand 1, single buffered']
    #allocation6 [shape = 's32[1]{0}', space=sflag, size = 0x4, scoped, tag = 'scoped memory for tpu_custom_call.1']
    #allocation7 [shape = 'u8[8192]{0}', space=vmem, size = 0x2000, scoped, tag = 'output window, operand 0']
    %8 = vsyncpa [#allocation3], 0
    %s9 = scalar_lea.sflag [#allocation3], 1
    %10 = vsyncpa %s9, 0
    %11 = vsyncpa [#allocation6], 0
    %12 = vsyncpa [#allocation4], 0
    %s13 = scalar_lea.sflag [#allocation4], 1
    %14 = vsyncpa %s13, 0
    loop: start=0, step=1, limit=4
    $region2: #{tpu_custom_call.1} parent=1 // loop_pre_header
      _
    $region3: #{tpu_custom_call.1} parent=1 // loop_header
      %s16 = sphi 0, %s20
      %p17 = scmp.ge.s32.totalorder %s16, 4
      %s26 = sphi 0, %s28
      %s29 = sphi 0, %s26
      %s30 = sphi 0, %s29
      %s46 = sphi 0, %s30
      %s50 = sphi 0, %s50
      %s52 = sphi 0, %s50
      %s53 = sphi 0, %s52
      %s67 = sphi 0, %s53
      %s71 = sphi 0, %s71
      %s73 = sphi 0, %s71
      %s74 = sphi 0, %s73
      %s88 = sphi 0, %s74
      %s94 = sphi 0, %s96
      %s97 = sphi 0, %s94
      %s98 = sphi 0, %s97
      %s114 = sphi 0, %s98
    $region4: #{tpu_custom_call.1} parent=1 // loop_header_branch
      %19 = sbr.rel (%p17) target = $region8
    $region5: #{tpu_custom_call.1} parent=1 // loop_body
      %s21 = ssub.s32 %s16, 1
      %s22 = ssub.s32 %s16, 2
      %s23 = sadd.s32 %s16, 1
      %s24 = ssub.s32 %s16, %s23
      %p25 = scmp.eq.s32.totalorder %s24, 0
      %s27 = sadd.s32 %s26, 1
      %s28 = scalar_select %p25, %s26, %s27
      %p31 = pneg %p25
      %p32 = scmp.eq.s32.totalorder %s16, 1
      %p33 = por %p31, %p32
      %p34 = scmp.ne.s32.totalorder %s26, %s29
      %p35 = scmp.eq.s32.totalorder %s16, 0
      %p36 = por %p34, %p35
      %p37 = scmp.ne.s32.totalorder %s26, %s29
      %p38 = scmp.eq.s32.totalorder %s21, 1
      %p39 = por %p37, %p38
      %p40 = scmp.ne.s32.totalorder %s29, %s30
      %p41 = scmp.eq.s32.totalorder %s21, 0
      %p42 = por %p40, %p41
      %p43 = scmp.ne.s32.totalorder %s29, %s30
      %p44 = scmp.eq.s32.totalorder %s22, 1
      %p45 = por %p43, %p44
      %p47 = scmp.ne.s32.totalorder %s30, %s46
      %p48 = scmp.eq.s32.totalorder %s22, 0
      %p49 = por %p47, %p48
      %s51 = sadd.s32 %s50, 1
      %p54 = scmp.eq.s32.totalorder %s16, 1
      %p55 = scmp.ne.s32.totalorder %s50, %s52
      %p56 = scmp.eq.s32.totalorder %s16, 0
      %p57 = por %p55, %p56
      %p58 = scmp.ne.s32.totalorder %s50, %s52
      %p59 = scmp.eq.s32.totalorder %s21, 1
      %p60 = por %p58, %p59
      %p61 = scmp.ne.s32.totalorder %s52, %s53
      %p62 = scmp.eq.s32.totalorder %s21, 0
      %p63 = por %p61, %p62
      %p64 = scmp.ne.s32.totalorder %s52, %s53
      %p65 = scmp.eq.s32.totalorder %s22, 1
      %p66 = por %p64, %p65
      %p68 = scmp.ne.s32.totalorder %s53, %s67
      %p69 = scmp.eq.s32.totalorder %s22, 0
      %p70 = por %p68, %p69
      %s72 = sadd.s32 %s71, 1
      %p75 = scmp.eq.s32.totalorder %s16, 1
      %p76 = scmp.ne.s32.totalorder %s71, %s73
      %p77 = scmp.eq.s32.totalorder %s16, 0
      %p78 = por %p76, %p77
      %p79 = scmp.ne.s32.totalorder %s71, %s73
      %p80 = scmp.eq.s32.totalorder %s21, 1
      %p81 = por %p79, %p80
      %p82 = scmp.ne.s32.totalorder %s73, %s74
      %p83 = scmp.eq.s32.totalorder %s21, 0
      %p84 = por %p82, %p83
      %p85 = scmp.ne.s32.totalorder %s73, %s74
      %p86 = scmp.eq.s32.totalorder %s22, 1
      %p87 = por %p85, %p86
      %p89 = scmp.ne.s32.totalorder %s74, %s88
      %p90 = scmp.eq.s32.totalorder %s22, 0
      %p91 = por %p89, %p90
      %s92 = ssub.s32 %s16, %s23
      %p93 = scmp.eq.s32.totalorder %s92, 0
      %s95 = sadd.s32 %s94, 1
      %s96 = scalar_select %p93, %s94, %s95
      %p99 = pneg %p93
      %p100 = scmp.eq.s32.totalorder %s16, 1
      %p101 = por %p99, %p100
      %p102 = scmp.ne.s32.totalorder %s94, %s97
      %p103 = scmp.eq.s32.totalorder %s16, 0
      %p104 = por %p102, %p103
      %p105 = scmp.ne.s32.totalorder %s94, %s97
      %p106 = scmp.eq.s32.totalorder %s21, 1
      %p107 = por %p105, %p106
      %p108 = scmp.ne.s32.totalorder %s97, %s98
      %p109 = scmp.eq.s32.totalorder %s21, 0
      %p110 = por %p108, %p109
      %p111 = scmp.ne.s32.totalorder %s97, %s98
      %p112 = scmp.eq.s32.totalorder %s22, 1
      %p113 = por %p111, %p112
      %p115 = scmp.ne.s32.totalorder %s98, %s114
      %p116 = scmp.eq.s32.totalorder %s22, 0
      %p117 = por %p115, %p116
      %p118 = scmp.le.s32.totalorder 1, %s16
      %p119 = scmp.lt.s32.totalorder %s16, 3
      %p120 = pnand %p118, %p119
      %p121 = pneg %p120
      // Predicated region
      $region9: #{tpu_custom_call.1} parent=5 // pred_check
        _
      $region10: #{tpu_custom_call.1} parent=5 // pred_check_branch
        %123 = sbr.rel (%p120) target = $region12
      $region11: #{tpu_custom_call.1} parent=5 // pred_region
        %s124 = ssub.s32 %s16, 1
        // Predicated region
        $region13: #{tpu_custom_call.1} parent=11 // pred_check
          %p125 = pneg %p63
        $region14: #{tpu_custom_call.1} parent=11 // pred_check_branch
          %127 = sbr.rel (%p125) target = $region16
        $region15: #{tpu_custom_call.1} parent=11 // pred_region
          %s129 = ssub.s32 1536, 1536
          %130 = vsyncadd [#allocation6], %s129
          %s131 = sshll.u32 [#allocation5], 4
          %s132 = int_to_ptr.vmem [resolvable:$true] %s131
          %137 = dma.hbm_to_vmem [thread:$0]  %s1, 1536, %s132, [#allocation6], 384, 384, 24
        $region16: #{tpu_custom_call.1} parent=11 // pred_fallthru
          _
        // Predicated region
        $region17: #{tpu_custom_call.1} parent=11 // pred_check
          %p138 = pneg %p84
        $region18: #{tpu_custom_call.1} parent=11 // pred_check_branch
          %140 = sbr.rel (%p138) target = $region20
        $region19: #{tpu_custom_call.1} parent=11 // pred_region
          _
        $region20: #{tpu_custom_call.1} parent=11 // pred_fallthru
          _
      $region12: #{tpu_custom_call.1} parent=5 // pred_fallthru
        _
      %p141 = scmp.lt.s32.totalorder %s16, 2
      // Predicated region
      $region21: #{tpu_custom_call.1} parent=5 // pred_check
        %p142 = pneg %p141
      $region22: #{tpu_custom_call.1} parent=5 // pred_check_branch
        %144 = sbr.rel (%p142) target = $region24
      $region23: #{tpu_custom_call.1} parent=5 // pred_region
        // Predicated region
        $region25: #{tpu_custom_call.1} parent=23 // pred_check
          %p145 = pneg %p36
        $region26: #{tpu_custom_call.1} parent=23 // pred_check_branch
          %147 = sbr.rel (%p145) target = $region28
        $region27: #{tpu_custom_call.1} parent=23 // pred_region
          %s148 = sand.u32 %s26, 1
          %s149 = scalar_lea.sflag [#allocation3], %s148
          %s150 = sand.u32 %s26, 1
          %s151 = smul.addr %s150, 8
          %s152 = scalar_lea.vmem [#allocation2], %s151
          %s154 = ssub.s32 128, 128
          %155 = vsyncadd %s149, %s154
          %s156 = smul.addr %s16, 128
          %s157 = scalar_lea.hbm %s0, %s156
          %s159 = sshll.u32 %s152, 4
          %s160 = int_to_ptr.vmem [resolvable:$true] %s159
          %162 = dma.hbm_to_vmem [thread:$0]  %s157, 128, %s160, %s149
        $region28: #{tpu_custom_call.1} parent=23 // pred_fallthru
          _
      $region24: #{tpu_custom_call.1} parent=5 // pred_fallthru
        _
      %p163 = scmp.le.s32.totalorder 1, %s16
      %p164 = scmp.lt.s32.totalorder %s16, 3
      %p165 = pnand %p163, %p164
      %p166 = pneg %p165
      // Predicated region
      $region29: #{tpu_custom_call.1} parent=5 // pred_check
        _
      $region30: #{tpu_custom_call.1} parent=5 // pred_check_branch
        %168 = sbr.rel (%p165) target = $region32
      $region31: #{tpu_custom_call.1} parent=5 // pred_region
        %s169 = ssub.s32 %s16, 1
        %s170 = sand.u32 %s29, 1
        %s171 = scalar_lea.sflag [#allocation3], %s170
        %s172 = sand.u32 %s29, 1
        %s173 = smul.addr %s172, 8
        %s174 = scalar_lea.vmem [#allocation2], %s173
        // Predicated region
        $region33: #{tpu_custom_call.1} parent=31 // pred_check
          %p175 = pneg %p42
        $region34: #{tpu_custom_call.1} parent=31 // pred_check_branch
          %177 = sbr.rel (%p175) target = $region36
        $region35: #{tpu_custom_call.1} parent=31 // pred_region
          %178 = dma.done %s171, 128
        $region36: #{tpu_custom_call.1} parent=31 // pred_fallthru
          _
        // Predicated region
        $region37: #{tpu_custom_call.1} parent=31 // pred_check
          %p179 = pneg %p63
        $region38: #{tpu_custom_call.1} parent=31 // pred_check_branch
          %181 = sbr.rel (%p179) target = $region40
        $region39: #{tpu_custom_call.1} parent=31 // pred_region
          %182 = dma.done [#allocation6], 1536
        $region40: #{tpu_custom_call.1} parent=31 // pred_fallthru
          _
        %s183 = sand.u32 %s29, 1
        %s184 = scalar_lea.sflag [#allocation3], %s183
        %s185 = sand.u32 %s29, 1
        %s186 = smul.addr %s185, 8
        %s187 = scalar_lea.vmem [#allocation2], %s186
        %p188 = pneg %p42
        %p189 = pneg %p39
        %p190 = pneg %p63
        %p191 = pneg %p60
        %p192 = pneg %p84
        %p193 = pneg %p81
        %p194 = pneg %p110
        %p195 = pneg %p107
        %s196 = sand.u32 %s97, 1
        %s197 = scalar_lea.sflag [#allocation4], %s196
        %s198 = sand.u32 %s97, 1
        %s199 = smul.addr %s198, 8
        %s200 = scalar_lea.vmem [#allocation7], %s199
        %v201 = vld [vmem:[%s174] sm:$0xff]
        %v202 = vld [vmem:[#allocation5] sm:$0xff]
        %v203 = vld [vmem:[#allocation5 + $0x8] sm:$0xff]
        %v204 = vld [vmem:[#allocation5 + $0x10] sm:$0xff]
        %v205 = vld [vmem:[#allocation5 + $0x18] sm:$0xff]
        %v206 = vld [vmem:[#allocation5 + $0x20] sm:$0xff]
        %v207 = vld [vmem:[#allocation5 + $0x28] sm:$0xff]
        %v208 = vld [vmem:[#allocation5 + $0x30] sm:$0xff]
        %v209 = vld [vmem:[#allocation5 + $0x38] sm:$0xff]
        %v210 = vld [vmem:[#allocation5 + $0x40] sm:$0xff]
        %v211 = vld [vmem:[#allocation5 + $0x48] sm:$0xff]
        %v212 = vld [vmem:[#allocation5 + $0x50] sm:$0xff]
        %v213 = vld [vmem:[#allocation5 + $0x58] sm:$0xff]
        %vm214 = vcmask 261120
        %v216 = vsel %vm214, %v201, 0
        %218 = vmatprep.subr.mxu0 %v203
        %219 = vmatpush1.msra.mxu0 %v202
        %220 = vmatprep.subr.mxu0 %v206
        %221 = vmatpush1.msra.mxu0 %v205
        %222 = vmatprep.subr.mxu0 %v209
        %223 = vmatpush1.msra.mxu0 %v208
        %224 = vmatprep.subr.mxu0 %v212
        %225 = vmatpush1.msra.mxu0 %v211
        %226 = vmatprep.subr.mxu0 0.0
        %227 = vmatpush1.msra.mxu0 0.0
        %228 = vmatprep.subr.mxu0 0.0
        %229 = vmatpush1.msra.mxu0 0.0
        %230 = vmatprep.subr.mxu0 0.0
        %231 = vmatpush1.msra.mxu0 0.0
        %232 = vmatprep.subr.mxu0 0.0
        %233 = vmatpush1.msra.mxu0 0.0
        %234 = vmatprep.subr.mxu0 0.0
        %235 = vmatpush1.msra.mxu0 0.0
        %236 = vmatprep.subr.mxu0 0.0
        %237 = vmatpush1.msra.mxu0 0.0
        %238 = vmatprep.subr.mxu0 0.0
        %239 = vmatpush1.msra.mxu0 0.0
        %240 = vmatprep.subr.mxu0 0.0
        %241 = vmatpush1.msra.mxu0 0.0
        %242 = vmatprep.subr.mxu0 0.0
        %243 = vmatpush1.msra.mxu0 0.0
        %244 = vmatprep.subr.mxu0 0.0
        %245 = vmatpush1.msra.mxu0 0.0
        %246 = vmatprep.subr.mxu0 0.0
        %247 = vmatpush1.msra.mxu0 0.0
        %248 = vmatprep.subr.mxu0 0.0
        %249 = vmatpush1.msra.mxu0 0.0
        %250 = vmatprep.subr.mxu0 0.0
        %251 = vmatpush1.msra.mxu0 0.0
        %252 = vmatprep.subr.mxu0 0.0
        %253 = vmatpush1.msra.mxu0 0.0
        %254 = vmatprep.subr.mxu0 0.0
        %255 = vmatpush1.msra.mxu0 0.0
        %256 = vmatprep.subr.mxu0 0.0
        %257 = vmatpush1.msra.mxu0 0.0
        %258 = vmatprep.subr.mxu0 0.0
        %259 = vmatpush1.msra.mxu0 0.0
        %260 = vmatprep.subr.mxu0 0.0
        %261 = vmatpush1.msra.mxu0 0.0
        %262 = vmatprep.subr.mxu0 0.0
        %263 = vmatpush1.msra.mxu0 0.0
        %264 = vmatprep.subr.mxu0 0.0
        %265 = vmatpush1.msra.mxu0 0.0
        %266 = vmatprep.subr.mxu0 0.0
        %267 = vmatpush1.msra.mxu0 0.0
        %268 = vmatprep.subr.mxu0 0.0
        %269 = vmatpush1.msra.mxu0 0.0
        %270 = vmatprep.subr.mxu0 0.0
        %271 = vmatpush1.msra.mxu0 0.0
        %272 = vmatprep.subr.mxu0 0.0
        %273 = vmatpush1.msra.mxu0 0.0
        %274 = vmatprep.subr.mxu0 0.0
        %275 = vmatpush1.msra.mxu0 0.0
        %276 = vmatprep.subr.mxu0 0.0
        %277 = vmatpush1.msra.mxu0 0.0
        %278 = vmatprep.subr.mxu0 0.0
        %279 = vmatpush1.msra.mxu0 0.0
        %280 = vmatprep.subr.mxu0 0.0
        %281 = vmatpush1.msra.mxu0 0.0
        %282 = vmatprep.mubr.f32.mxu0 0.0
        %283 = vmatmul.mubr.f32.gmra.mrb[0].mxu0 %v216
        %v284 = vpop.f32.mrb[0].mxu0
        %v285 = vadd.f32 0.0, %v284
        %v286 = vpop.f32.mrb[0].mxu0
        %v287 = vadd.f32 0.0, %v286
        %288 = vdwg.mxu0
        %289 = vmatprep.subr.mxu0 0.0
        %290 = vmatpush1.msra.mxu0 %v204
        %291 = vmatprep.subr.mxu0 0.0
        %292 = vmatpush1.msra.mxu0 %v207
        %293 = vmatprep.subr.mxu0 0.0
        %294 = vmatpush1.msra.mxu0 %v210
        %295 = vmatprep.subr.mxu0 0.0
        %296 = vmatpush1.msra.mxu0 %v213
        %297 = vmatprep.subr.mxu0 0.0
        %298 = vmatpush1.msra.mxu0 0.0
        %299 = vmatprep.subr.mxu0 0.0
        %300 = vmatpush1.msra.mxu0 0.0
        %301 = vmatprep.subr.mxu0 0.0
        %302 = vmatpush1.msra.mxu0 0.0
        %303 = vmatprep.subr.mxu0 0.0
        %304 = vmatpush1.msra.mxu0 0.0
        %305 = vmatprep.subr.mxu0 0.0
        %306 = vmatpush1.msra.mxu0 0.0
        %307 = vmatprep.subr.mxu0 0.0
        %308 = vmatpush1.msra.mxu0 0.0
        %309 = vmatprep.subr.mxu0 0.0
        %310 = vmatpush1.msra.mxu0 0.0
        %311 = vmatprep.subr.mxu0 0.0
        %312 = vmatpush1.msra.mxu0 0.0
        %313 = vmatprep.subr.mxu0 0.0
        %314 = vmatpush1.msra.mxu0 0.0
        %315 = vmatprep.subr.mxu0 0.0
        %316 = vmatpush1.msra.mxu0 0.0
        %317 = vmatprep.subr.mxu0 0.0
        %318 = vmatpush1.msra.mxu0 0.0
        %319 = vmatprep.subr.mxu0 0.0
        %320 = vmatpush1.msra.mxu0 0.0
        %321 = vmatprep.subr.mxu0 0.0
        %322 = vmatpush1.msra.mxu0 0.0
        %323 = vmatprep.subr.mxu0 0.0
        %324 = vmatpush1.msra.mxu0 0.0
        %325 = vmatprep.subr.mxu0 0.0
        %326 = vmatpush1.msra.mxu0 0.0
        %327 = vmatprep.subr.mxu0 0.0
        %328 = vmatpush1.msra.mxu0 0.0
        %329 = vmatprep.subr.mxu0 0.0
        %330 = vmatpush1.msra.mxu0 0.0
        %331 = vmatprep.subr.mxu0 0.0
        %332 = vmatpush1.msra.mxu0 0.0
        %333 = vmatprep.subr.mxu0 0.0
        %334 = vmatpush1.msra.mxu0 0.0
        %335 = vmatprep.subr.mxu0 0.0
        %336 = vmatpush1.msra.mxu0 0.0
        %337 = vmatprep.subr.mxu0 0.0
        %338 = vmatpush1.msra.mxu0 0.0
        %339 = vmatprep.subr.mxu0 0.0
        %340 = vmatpush1.msra.mxu0 0.0
        %341 = vmatprep.subr.mxu0 0.0
        %342 = vmatpush1.msra.mxu0 0.0
        %343 = vmatprep.subr.mxu0 0.0
        %344 = vmatpush1.msra.mxu0 0.0
        %345 = vmatprep.subr.mxu0 0.0
        %346 = vmatpush1.msra.mxu0 0.0
        %347 = vmatprep.subr.mxu0 0.0
        %348 = vmatpush1.msra.mxu0 0.0
        %349 = vmatprep.subr.mxu0 0.0
        %350 = vmatpush1.msra.mxu0 0.0
        %351 = vmatprep.subr.mxu0 0.0
        %352 = vmatpush1.msra.mxu0 0.0
        %353 = vmatprep.mubr.f32.mxu0 0.0
        %354 = vmatmul.mubr.f32.gmra.mrb[0].mxu0 %v216
        %v355 = vpop.f32.mrb[0].mxu0
        %v356 = vadd.f32 0.0, %v355
        %v357 = vpop.f32.mrb[0].mxu0
        %358 = vdwg.mxu0
        %v359 = vlaneseq
        %v360 = vshrl.u32 %v359, 7
        %v361 = vlaneseq
        %v362 = vand.u32 %v361, 127
        %vm363 = vcmp.le.s32.totalorder %v362, %v360
        %v364 = vld [vmem:[%s2] sm:$0x1]
        %v366 = vlaneseq
        %v367 = vshrl.u32 %v366, 7
        %v368 = vsub.s32 0, %v367
        %v369 = vrot.slane %v364, %v368
        %v372 = vsel %vm214, %v285, 0
        %v375 = vsel %vm214, %v287, 0
        %377 = vmatprep.subr.mxu0 0.0
        %378 = vmatpush1.xpose.msra.mxu0 %v375
        %379 = vmatprep.subr.mxu0 0.0
        %380 = vmatpush1.xpose.msra.mxu0 0.0
        %381 = vmatprep.subr.mxu0 0.0
        %382 = vmatpush1.xpose.msra.mxu0 0.0
        %383 = vmatprep.subr.mxu0 0.0
        %384 = vmatpush1.xpose.msra.mxu0 0.0
        %385 = vmatprep.subr.mxu0 0.0
        %386 = vmatpush1.xpose.msra.mxu0 0.0
        %387 = vmatprep.subr.mxu0 0.0
        %388 = vmatpush1.xpose.msra.mxu0 0.0
        %389 = vmatprep.subr.mxu0 0.0
        %390 = vmatpush1.xpose.msra.mxu0 0.0
        %391 = vmatprep.subr.mxu0 0.0
        %392 = vmatpush1.xpose.msra.mxu0 0.0
        %393 = vmatprep.subr.mxu0 0.0
        %394 = vmatpush1.xpose.msra.mxu0 0.0
        %395 = vmatprep.subr.mxu0 0.0
        %396 = vmatpush1.xpose.msra.mxu0 0.0
        %397 = vmatprep.subr.mxu0 0.0
        %398 = vmatpush1.xpose.msra.mxu0 0.0
        %399 = vmatprep.subr.mxu0 0.0
        %400 = vmatpush1.xpose.msra.mxu0 0.0
        %401 = vmatprep.subr.mxu0 0.0
        %402 = vmatpush1.xpose.msra.mxu0 0.0
        %403 = vmatprep.subr.mxu0 0.0
        %404 = vmatpush1.xpose.msra.mxu0 0.0
        %405 = vmatprep.subr.mxu0 0.0
        %406 = vmatpush1.xpose.msra.mxu0 0.0
        %407 = vmatprep.subr.mxu0 0.0
        %408 = vmatpush1.xpose.msra.mxu0 0.0
        %409 = vmatprep.subr.mxu0 0.0
        %410 = vmatpush1.xpose.msra.mxu0 0.0
        %411 = vmatprep.subr.mxu0 0.0
        %412 = vmatpush1.xpose.msra.mxu0 0.0
        %413 = vmatprep.subr.mxu0 0.0
        %414 = vmatpush1.xpose.msra.mxu0 0.0
        %415 = vmatprep.subr.mxu0 0.0
        %416 = vmatpush1.xpose.msra.mxu0 0.0
        %417 = vmatprep.subr.mxu0 0.0
        %418 = vmatpush1.xpose.msra.mxu0 0.0
        %419 = vmatprep.subr.mxu0 0.0
        %420 = vmatpush1.xpose.msra.mxu0 0.0
        %421 = vmatprep.subr.mxu0 0.0
        %422 = vmatpush1.xpose.msra.mxu0 0.0
        %423 = vmatprep.subr.mxu0 0.0
        %424 = vmatpush1.xpose.msra.mxu0 0.0
        %425 = vmatprep.subr.mxu0 0.0
        %426 = vmatpush1.xpose.msra.mxu0 0.0
        %427 = vmatprep.subr.mxu0 0.0
        %428 = vmatpush1.xpose.msra.mxu0 0.0
        %429 = vmatprep.subr.mxu0 0.0
        %430 = vmatpush1.xpose.msra.mxu0 0.0
        %431 = vmatprep.subr.mxu0 0.0
        %432 = vmatpush1.xpose.msra.mxu0 0.0
        %433 = vmatprep.subr.mxu0 0.0
        %434 = vmatpush1.xpose.msra.mxu0 0.0
        %435 = vmatprep.subr.mxu0 0.0
        %436 = vmatpush1.xpose.msra.mxu0 0.0
        %437 = vmatprep.subr.mxu0 0.0
        %438 = vmatpush1.xpose.msra.mxu0 0.0
        %439 = vmatprep.subr.mxu0 0.0
        %440 = vmatpush1.xpose.msra.mxu0 0.0
        %441 = vmatprep.mubr.f32.mxu0 0.0
        %442 = vmatmul.mubr.f32.gmra.mrb[0].mxu0 %v372
        %v443 = vpop.f32.mrb[0].mxu0
        %v444 = vadd.f32 0.0, %v443
        %v445 = vpop.f32.mrb[0].mxu0
        %446 = vdwg.mxu0
        %v447 = vsel %vm363, %v444, -1e+30
        %vm448 = vcmask 64512
        %v449 = vsel %vm448, %v447, -inf
        %450 = vmax.xlane.f32.xlu0 %v449
        %v451 = vpop.xlane.xlu0 %450
        %v452 = vsub.f32 %v447, %v451
        %v453 = vmul.f32 %v452, 1.442695
        %v454 = vpow.pop %v453
        %v455 = vsel %vm448, %v454, 0.0
        %456 = vadd.xlane.f32.xlu0 %v455
        %v457 = vpop.xlane.xlu0 %456
        %v458 = vrcp.pop %v457
        %v459 = vmul.f32 %v454, %v458
        %v461 = vsel %vm448, %v459, 0
        %463 = vmatprep.subr.mxu0 0.0
        %464 = vmatpush1.msra.mxu0 %v356
        %465 = vmatprep.subr.mxu0 0.0
        %466 = vmatpush1.msra.mxu0 0.0
        %467 = vmatprep.subr.mxu0 0.0
        %468 = vmatpush1.msra.mxu0 0.0
        %469 = vmatprep.subr.mxu0 0.0
        %470 = vmatpush1.msra.mxu0 0.0
        %471 = vmatprep.subr.mxu0 0.0
        %472 = vmatpush1.msra.mxu0 0.0
        %473 = vmatprep.subr.mxu0 0.0
        %474 = vmatpush1.msra.mxu0 0.0
        %475 = vmatprep.subr.mxu0 0.0
        %476 = vmatpush1.msra.mxu0 0.0
        %477 = vmatprep.subr.mxu0 0.0
        %478 = vmatpush1.msra.mxu0 0.0
        %479 = vmatprep.subr.mxu0 0.0
        %480 = vmatpush1.msra.mxu0 0.0
        %481 = vmatprep.subr.mxu0 0.0
        %482 = vmatpush1.msra.mxu0 0.0
        %483 = vmatprep.subr.mxu0 0.0
        %484 = vmatpush1.msra.mxu0 0.0
        %485 = vmatprep.subr.mxu0 0.0
        %486 = vmatpush1.msra.mxu0 0.0
        %487 = vmatprep.subr.mxu0 0.0
        %488 = vmatpush1.msra.mxu0 0.0
        %489 = vmatprep.subr.mxu0 0.0
        %490 = vmatpush1.msra.mxu0 0.0
        %491 = vmatprep.subr.mxu0 0.0
        %492 = vmatpush1.msra.mxu0 0.0
        %493 = vmatprep.subr.mxu0 0.0
        %494 = vmatpush1.msra.mxu0 0.0
        %495 = vmatprep.subr.mxu0 0.0
        %496 = vmatpush1.msra.mxu0 0.0
        %497 = vmatprep.subr.mxu0 0.0
        %498 = vmatpush1.msra.mxu0 0.0
        %499 = vmatprep.subr.mxu0 0.0
        %500 = vmatpush1.msra.mxu0 0.0
        %501 = vmatprep.subr.mxu0 0.0
        %502 = vmatpush1.msra.mxu0 0.0
        %503 = vmatprep.subr.mxu0 0.0
        %504 = vmatpush1.msra.mxu0 0.0
        %505 = vmatprep.subr.mxu0 0.0
        %506 = vmatpush1.msra.mxu0 0.0
        %507 = vmatprep.subr.mxu0 0.0
        %508 = vmatpush1.msra.mxu0 0.0
        %509 = vmatprep.subr.mxu0 0.0
        %510 = vmatpush1.msra.mxu0 0.0
        %511 = vmatprep.subr.mxu0 0.0
        %512 = vmatpush1.msra.mxu0 0.0
        %513 = vmatprep.subr.mxu0 0.0
        %514 = vmatpush1.msra.mxu0 0.0
        %515 = vmatprep.subr.mxu0 0.0
        %516 = vmatpush1.msra.mxu0 0.0
        %517 = vmatprep.subr.mxu0 0.0
        %518 = vmatpush1.msra.mxu0 0.0
        %519 = vmatprep.subr.mxu0 0.0
        %520 = vmatpush1.msra.mxu0 0.0
        %521 = vmatprep.subr.mxu0 0.0
        %522 = vmatpush1.msra.mxu0 0.0
        %523 = vmatprep.subr.mxu0 0.0
        %524 = vmatpush1.msra.mxu0 0.0
        %525 = vmatprep.subr.mxu0 0.0
        %526 = vmatpush1.msra.mxu0 0.0
        %527 = vmatprep.mubr.f32.mxu0 0.0
        %528 = vmatmul.mubr.f32.gmra.mrb[0].mxu0 %v461
        %v529 = vpop.f32.mrb[0].mxu0
        %v530 = vadd.f32 0.0, %v529
        %v531 = vpop.f32.mrb[0].mxu0
        %532 = vdwg.mxu0
        %v533 = vadd.f32 %v369, %v530
        %534 = vrot.lane.b32.xlu0 %v285, 96
        %v535 = vpop.permute.xlu0 %534
        %536 = vrot.lane.b32.xlu0 %v287, 96
        %v537 = vpop.permute.xlu0 %536
        %v538 = vsel %vm214, %v535, 0
        %v540 = vsel %vm214, %v537, 0
        %542 = vmatprep.subr.mxu0 0.0
        %543 = vmatpush1.xpose.msra.mxu0 %v540
        %544 = vmatprep.subr.mxu0 0.0
        %545 = vmatpush1.xpose.msra.mxu0 0.0
        %546 = vmatprep.subr.mxu0 0.0
        %547 = vmatpush1.xpose.msra.mxu0 0.0
        %548 = vmatprep.subr.mxu0 0.0
        %549 = vmatpush1.xpose.msra.mxu0 0.0
        %550 = vmatprep.subr.mxu0 0.0
        %551 = vmatpush1.xpose.msra.mxu0 0.0
        %552 = vmatprep.subr.mxu0 0.0
        %553 = vmatpush1.xpose.msra.mxu0 0.0
        %554 = vmatprep.subr.mxu0 0.0
        %555 = vmatpush1.xpose.msra.mxu0 0.0
        %556 = vmatprep.subr.mxu0 0.0
        %557 = vmatpush1.xpose.msra.mxu0 0.0
        %558 = vmatprep.subr.mxu0 0.0
        %559 = vmatpush1.xpose.msra.mxu0 0.0
        %560 = vmatprep.subr.mxu0 0.0
        %561 = vmatpush1.xpose.msra.mxu0 0.0
        %562 = vmatprep.subr.mxu0 0.0
        %563 = vmatpush1.xpose.msra.mxu0 0.0
        %564 = vmatprep.subr.mxu0 0.0
        %565 = vmatpush1.xpose.msra.mxu0 0.0
        %566 = vmatprep.subr.mxu0 0.0
        %567 = vmatpush1.xpose.msra.mxu0 0.0
        %568 = vmatprep.subr.mxu0 0.0
        %569 = vmatpush1.xpose.msra.mxu0 0.0
        %570 = vmatprep.subr.mxu0 0.0
        %571 = vmatpush1.xpose.msra.mxu0 0.0
        %572 = vmatprep.subr.mxu0 0.0
        %573 = vmatpush1.xpose.msra.mxu0 0.0
        %574 = vmatprep.subr.mxu0 0.0
        %575 = vmatpush1.xpose.msra.mxu0 0.0
        %576 = vmatprep.subr.mxu0 0.0
        %577 = vmatpush1.xpose.msra.mxu0 0.0
        %578 = vmatprep.subr.mxu0 0.0
        %579 = vmatpush1.xpose.msra.mxu0 0.0
        %580 = vmatprep.subr.mxu0 0.0
        %581 = vmatpush1.xpose.msra.mxu0 0.0
        %582 = vmatprep.subr.mxu0 0.0
        %583 = vmatpush1.xpose.msra.mxu0 0.0
        %584 = vmatprep.subr.mxu0 0.0
        %585 = vmatpush1.xpose.msra.mxu0 0.0
        %586 = vmatprep.subr.mxu0 0.0
        %587 = vmatpush1.xpose.msra.mxu0 0.0
        %588 = vmatprep.subr.mxu0 0.0
        %589 = vmatpush1.xpose.msra.mxu0 0.0
        %590 = vmatprep.subr.mxu0 0.0
        %591 = vmatpush1.xpose.msra.mxu0 0.0
        %592 = vmatprep.subr.mxu0 0.0
        %593 = vmatpush1.xpose.msra.mxu0 0.0
        %594 = vmatprep.subr.mxu0 0.0
        %595 = vmatpush1.xpose.msra.mxu0 0.0
        %596 = vmatprep.subr.mxu0 0.0
        %597 = vmatpush1.xpose.msra.mxu0 0.0
        %598 = vmatprep.subr.mxu0 0.0
        %599 = vmatpush1.xpose.msra.mxu0 0.0
        %600 = vmatprep.subr.mxu0 0.0
        %601 = vmatpush1.xpose.msra.mxu0 0.0
        %602 = vmatprep.subr.mxu0 0.0
        %603 = vmatpush1.xpose.msra.mxu0 0.0
        %604 = vmatprep.subr.mxu0 0.0
        %605 = vmatpush1.xpose.msra.mxu0 0.0
        %606 = vmatprep.mubr.f32.mxu0 0.0
        %607 = vmatmul.mubr.f32.gmra.mrb[0].mxu0 %v538
        %v608 = vpop.f32.mrb[0].mxu0
        %v609 = vadd.f32 0.0, %v608
        %v610 = vpop.f32.mrb[0].mxu0
        %611 = vdwg.mxu0
        %v612 = vsel %vm363, %v609, -1e+30
        %v613 = vsel %vm448, %v612, -inf
        %614 = vmax.xlane.f32.xlu0 %v613
        %v615 = vpop.xlane.xlu0 %614
        %v616 = vsub.f32 %v612, %v615
        %v617 = vmul.f32 %v616, 1.442695
        %v618 = vpow.pop %v617
        %v619 = vsel %vm448, %v618, 0.0
        %620 = vadd.xlane.f32.xlu0 %v619
        %v621 = vpop.xlane.xlu0 %620
        %v622 = vrcp.pop %v621
        %v623 = vmul.f32 %v618, %v622
        %625 = vrot.lane.b32.xlu0 %v356, 96
        %v626 = vpop.permute.xlu0 %625
        %v629 = vsel %vm448, %v623, 0
        %631 = vmatprep.subr.mxu0 0.0
        %632 = vmatpush1.msra.mxu0 %v626
        %633 = vmatprep.subr.mxu0 0.0
        %634 = vmatpush1.msra.mxu0 0.0
        %635 = vmatprep.subr.mxu0 0.0
        %636 = vmatpush1.msra.mxu0 0.0
        %637 = vmatprep.subr.mxu0 0.0
        %638 = vmatpush1.msra.mxu0 0.0
        %639 = vmatprep.subr.mxu0 0.0
        %640 = vmatpush1.msra.mxu0 0.0
        %641 = vmatprep.subr.mxu0 0.0
        %642 = vmatpush1.msra.mxu0 0.0
        %643 = vmatprep.subr.mxu0 0.0
        %644 = vmatpush1.msra.mxu0 0.0
        %645 = vmatprep.subr.mxu0 0.0
        %646 = vmatpush1.msra.mxu0 0.0
        %647 = vmatprep.subr.mxu0 0.0
        %648 = vmatpush1.msra.mxu0 0.0
        %649 = vmatprep.subr.mxu0 0.0
        %650 = vmatpush1.msra.mxu0 0.0
        %651 = vmatprep.subr.mxu0 0.0
        %652 = vmatpush1.msra.mxu0 0.0
        %653 = vmatprep.subr.mxu0 0.0
        %654 = vmatpush1.msra.mxu0 0.0
        %655 = vmatprep.subr.mxu0 0.0
        %656 = vmatpush1.msra.mxu0 0.0
        %657 = vmatprep.subr.mxu0 0.0
        %658 = vmatpush1.msra.mxu0 0.0
        %659 = vmatprep.subr.mxu0 0.0
        %660 = vmatpush1.msra.mxu0 0.0
        %661 = vmatprep.subr.mxu0 0.0
        %662 = vmatpush1.msra.mxu0 0.0
        %663 = vmatprep.subr.mxu0 0.0
        %664 = vmatpush1.msra.mxu0 0.0
        %665 = vmatprep.subr.mxu0 0.0
        %666 = vmatpush1.msra.mxu0 0.0
        %667 = vmatprep.subr.mxu0 0.0
        %668 = vmatpush1.msra.mxu0 0.0
        %669 = vmatprep.subr.mxu0 0.0
        %670 = vmatpush1.msra.mxu0 0.0
        %671 = vmatprep.subr.mxu0 0.0
        %672 = vmatpush1.msra.mxu0 0.0
        %673 = vmatprep.subr.mxu0 0.0
        %674 = vmatpush1.msra.mxu0 0.0
        %675 = vmatprep.subr.mxu0 0.0
        %676 = vmatpush1.msra.mxu0 0.0
        %677 = vmatprep.subr.mxu0 0.0
        %678 = vmatpush1.msra.mxu0 0.0
        %679 = vmatprep.subr.mxu0 0.0
        %680 = vmatpush1.msra.mxu0 0.0
        %681 = vmatprep.subr.mxu0 0.0
        %682 = vmatpush1.msra.mxu0 0.0
        %683 = vmatprep.subr.mxu0 0.0
        %684 = vmatpush1.msra.mxu0 0.0
        %685 = vmatprep.subr.mxu0 0.0
        %686 = vmatpush1.msra.mxu0 0.0
        %687 = vmatprep.subr.mxu0 0.0
        %688 = vmatpush1.msra.mxu0 0.0
        %689 = vmatprep.subr.mxu0 0.0
        %690 = vmatpush1.msra.mxu0 0.0
        %691 = vmatprep.subr.mxu0 0.0
        %692 = vmatpush1.msra.mxu0 0.0
        %693 = vmatprep.subr.mxu0 0.0
        %694 = vmatpush1.msra.mxu0 0.0
        %695 = vmatprep.mubr.f32.mxu0 0.0
        %696 = vmatmul.mubr.f32.gmra.mrb[0].mxu0 %v629
        %v697 = vpop.f32.mrb[0].mxu0
        %v698 = vadd.f32 0.0, %v697
        %v699 = vpop.f32.mrb[0].mxu0
        %700 = vdwg.mxu0
        %v701 = vadd.f32 %v533, %v698
        %702 = vrot.lane.b32.xlu0 %v285, 64
        %v703 = vpop.permute.xlu0 %702
        %704 = vrot.lane.b32.xlu0 %v287, 64
        %v705 = vpop.permute.xlu0 %704
        %v706 = vsel %vm214, %v703, 0
        %v708 = vsel %vm214, %v705, 0
        %710 = vmatprep.subr.mxu0 0.0
        %711 = vmatpush1.xpose.msra.mxu0 %v708
        %712 = vmatprep.subr.mxu0 0.0
        %713 = vmatpush1.xpose.msra.mxu0 0.0
        %714 = vmatprep.subr.mxu0 0.0
        %715 = vmatpush1.xpose.msra.mxu0 0.0
        %716 = vmatprep.subr.mxu0 0.0
        %717 = vmatpush1.xpose.msra.mxu0 0.0
        %718 = vmatprep.subr.mxu0 0.0
        %719 = vmatpush1.xpose.msra.mxu0 0.0
        %720 = vmatprep.subr.mxu0 0.0
        %721 = vmatpush1.xpose.msra.mxu0 0.0
        %722 = vmatprep.subr.mxu0 0.0
        %723 = vmatpush1.xpose.msra.mxu0 0.0
        %724 = vmatprep.subr.mxu0 0.0
        %725 = vmatpush1.xpose.msra.mxu0 0.0
        %726 = vmatprep.subr.mxu0 0.0
        %727 = vmatpush1.xpose.msra.mxu0 0.0
        %728 = vmatprep.subr.mxu0 0.0
        %729 = vmatpush1.xpose.msra.mxu0 0.0
        %730 = vmatprep.subr.mxu0 0.0
        %731 = vmatpush1.xpose.msra.mxu0 0.0
        %732 = vmatprep.subr.mxu0 0.0
        %733 = vmatpush1.xpose.msra.mxu0 0.0
        %734 = vmatprep.subr.mxu0 0.0
        %735 = vmatpush1.xpose.msra.mxu0 0.0
        %736 = vmatprep.subr.mxu0 0.0
        %737 = vmatpush1.xpose.msra.mxu0 0.0
        %738 = vmatprep.subr.mxu0 0.0
        %739 = vmatpush1.xpose.msra.mxu0 0.0
        %740 = vmatprep.subr.mxu0 0.0
        %741 = vmatpush1.xpose.msra.mxu0 0.0
        %742 = vmatprep.subr.mxu0 0.0
        %743 = vmatpush1.xpose.msra.mxu0 0.0
        %744 = vmatprep.subr.mxu0 0.0
        %745 = vmatpush1.xpose.msra.mxu0 0.0
        %746 = vmatprep.subr.mxu0 0.0
        %747 = vmatpush1.xpose.msra.mxu0 0.0
        %748 = vmatprep.subr.mxu0 0.0
        %749 = vmatpush1.xpose.msra.mxu0 0.0
        %750 = vmatprep.subr.mxu0 0.0
        %751 = vmatpush1.xpose.msra.mxu0 0.0
        %752 = vmatprep.subr.mxu0 0.0
        %753 = vmatpush1.xpose.msra.mxu0 0.0
        %754 = vmatprep.subr.mxu0 0.0
        %755 = vmatpush1.xpose.msra.mxu0 0.0
        %756 = vmatprep.subr.mxu0 0.0
        %757 = vmatpush1.xpose.msra.mxu0 0.0
        %758 = vmatprep.subr.mxu0 0.0
        %759 = vmatpush1.xpose.msra.mxu0 0.0
        %760 = vmatprep.subr.mxu0 0.0
        %761 = vmatpush1.xpose.msra.mxu0 0.0
        %762 = vmatprep.subr.mxu0 0.0
        %763 = vmatpush1.xpose.msra.mxu0 0.0
        %764 = vmatprep.subr.mxu0 0.0
        %765 = vmatpush1.xpose.msra.mxu0 0.0
        %766 = vmatprep.subr.mxu0 0.0
        %767 = vmatpush1.xpose.msra.mxu0 0.0
        %768 = vmatprep.subr.mxu0 0.0
        %769 = vmatpush1.xpose.msra.mxu0 0.0
        %770 = vmatprep.subr.mxu0 0.0
        %771 = vmatpush1.xpose.msra.mxu0 0.0
        %772 = vmatprep.subr.mxu0 0.0
        %773 = vmatpush1.xpose.msra.mxu0 0.0
        %774 = vmatprep.mubr.f32.mxu0 0.0
        %775 = vmatmul.mubr.f32.gmra.mrb[0].mxu0 %v706
        %v776 = vpop.f32.mrb[0].mxu0
        %v777 = vadd.f32 0.0, %v776
        %v778 = vpop.f32.mrb[0].mxu0
        %779 = vdwg.mxu0
        %v780 = vsel %vm363, %v777, -1e+30
        %v781 = vsel %vm448, %v780, -inf
        %782 = vmax.xlane.f32.xlu0 %v781
        %v783 = vpop.xlane.xlu0 %782
        %v784 = vsub.f32 %v780, %v783
        %v785 = vmul.f32 %v784, 1.442695
        %v786 = vpow.pop %v785
        %v787 = vsel %vm448, %v786, 0.0
        %788 = vadd.xlane.f32.xlu0 %v787
        %v789 = vpop.xlane.xlu0 %788
        %v790 = vrcp.pop %v789
        %v791 = vmul.f32 %v786, %v790
        %792 = vrot.lane.b32.xlu0 %v356, 64
        %v793 = vpop.permute.xlu0 %792
        %v796 = vsel %vm448, %v791, 0
        %798 = vmatprep.subr.mxu0 0.0
        %799 = vmatpush1.msra.mxu0 %v793
        %800 = vmatprep.subr.mxu0 0.0
        %801 = vmatpush1.msra.mxu0 0.0
        %802 = vmatprep.subr.mxu0 0.0
        %803 = vmatpush1.msra.mxu0 0.0
        %804 = vmatprep.subr.mxu0 0.0
        %805 = vmatpush1.msra.mxu0 0.0
        %806 = vmatprep.subr.mxu0 0.0
        %807 = vmatpush1.msra.mxu0 0.0
        %808 = vmatprep.subr.mxu0 0.0
        %809 = vmatpush1.msra.mxu0 0.0
        %810 = vmatprep.subr.mxu0 0.0
        %811 = vmatpush1.msra.mxu0 0.0
        %812 = vmatprep.subr.mxu0 0.0
        %813 = vmatpush1.msra.mxu0 0.0
        %814 = vmatprep.subr.mxu0 0.0
        %815 = vmatpush1.msra.mxu0 0.0
        %816 = vmatprep.subr.mxu0 0.0
        %817 = vmatpush1.msra.mxu0 0.0
        %818 = vmatprep.subr.mxu0 0.0
        %819 = vmatpush1.msra.mxu0 0.0
        %820 = vmatprep.subr.mxu0 0.0
        %821 = vmatpush1.msra.mxu0 0.0
        %822 = vmatprep.subr.mxu0 0.0
        %823 = vmatpush1.msra.mxu0 0.0
        %824 = vmatprep.subr.mxu0 0.0
        %825 = vmatpush1.msra.mxu0 0.0
        %826 = vmatprep.subr.mxu0 0.0
        %827 = vmatpush1.msra.mxu0 0.0
        %828 = vmatprep.subr.mxu0 0.0
        %829 = vmatpush1.msra.mxu0 0.0
        %830 = vmatprep.subr.mxu0 0.0
        %831 = vmatpush1.msra.mxu0 0.0
        %832 = vmatprep.subr.mxu0 0.0
        %833 = vmatpush1.msra.mxu0 0.0
        %834 = vmatprep.subr.mxu0 0.0
        %835 = vmatpush1.msra.mxu0 0.0
        %836 = vmatprep.subr.mxu0 0.0
        %837 = vmatpush1.msra.mxu0 0.0
        %838 = vmatprep.subr.mxu0 0.0
        %839 = vmatpush1.msra.mxu0 0.0
        %840 = vmatprep.subr.mxu0 0.0
        %841 = vmatpush1.msra.mxu0 0.0
        %842 = vmatprep.subr.mxu0 0.0
        %843 = vmatpush1.msra.mxu0 0.0
        %844 = vmatprep.subr.mxu0 0.0
        %845 = vmatpush1.msra.mxu0 0.0
        %846 = vmatprep.subr.mxu0 0.0
        %847 = vmatpush1.msra.mxu0 0.0
        %848 = vmatprep.subr.mxu0 0.0
        %849 = vmatpush1.msra.mxu0 0.0
        %850 = vmatprep.subr.mxu0 0.0
        %851 = vmatpush1.msra.mxu0 0.0
        %852 = vmatprep.subr.mxu0 0.0
        %853 = vmatpush1.msra.mxu0 0.0
        %854 = vmatprep.subr.mxu0 0.0
        %855 = vmatpush1.msra.mxu0 0.0
        %856 = vmatprep.subr.mxu0 0.0
        %857 = vmatpush1.msra.mxu0 0.0
        %858 = vmatprep.subr.mxu0 0.0
        %859 = vmatpush1.msra.mxu0 0.0
        %860 = vmatprep.subr.mxu0 0.0
        %861 = vmatpush1.msra.mxu0 0.0
        %862 = vmatprep.mubr.f32.mxu0 0.0
        %863 = vmatmul.mubr.f32.gmra.mrb[0].mxu0 %v796
        %v864 = vpop.f32.mrb[0].mxu0
        %v865 = vadd.f32 0.0, %v864
        %v866 = vpop.f32.mrb[0].mxu0
        %867 = vdwg.mxu0
        %v868 = vadd.f32 %v701, %v865
        %869 = vrot.lane.b32.xlu0 %v285, 32
        %v870 = vpop.permute.xlu0 %869
        %871 = vrot.lane.b32.xlu0 %v287, 32
        %v872 = vpop.permute.xlu0 %871
        %v873 = vsel %vm214, %v870, 0
        %v875 = vsel %vm214, %v872, 0
        %877 = vmatprep.subr.mxu0 0.0
        %878 = vmatpush1.xpose.msra.mxu0 %v875
        %879 = vmatprep.subr.mxu0 0.0
        %880 = vmatpush1.xpose.msra.mxu0 0.0
        %881 = vmatprep.subr.mxu0 0.0
        %882 = vmatpush1.xpose.msra.mxu0 0.0
        %883 = vmatprep.subr.mxu0 0.0
        %884 = vmatpush1.xpose.msra.mxu0 0.0
        %885 = vmatprep.subr.mxu0 0.0
        %886 = vmatpush1.xpose.msra.mxu0 0.0
        %887 = vmatprep.subr.mxu0 0.0
        %888 = vmatpush1.xpose.msra.mxu0 0.0
        %889 = vmatprep.subr.mxu0 0.0
        %890 = vmatpush1.xpose.msra.mxu0 0.0
        %891 = vmatprep.subr.mxu0 0.0
        %892 = vmatpush1.xpose.msra.mxu0 0.0
        %893 = vmatprep.subr.mxu0 0.0
        %894 = vmatpush1.xpose.msra.mxu0 0.0
        %895 = vmatprep.subr.mxu0 0.0
        %896 = vmatpush1.xpose.msra.mxu0 0.0
        %897 = vmatprep.subr.mxu0 0.0
        %898 = vmatpush1.xpose.msra.mxu0 0.0
        %899 = vmatprep.subr.mxu0 0.0
        %900 = vmatpush1.xpose.msra.mxu0 0.0
        %901 = vmatprep.subr.mxu0 0.0
        %902 = vmatpush1.xpose.msra.mxu0 0.0
        %903 = vmatprep.subr.mxu0 0.0
        %904 = vmatpush1.xpose.msra.mxu0 0.0
        %905 = vmatprep.subr.mxu0 0.0
        %906 = vmatpush1.xpose.msra.mxu0 0.0
        %907 = vmatprep.subr.mxu0 0.0
        %908 = vmatpush1.xpose.msra.mxu0 0.0
        %909 = vmatprep.subr.mxu0 0.0
        %910 = vmatpush1.xpose.msra.mxu0 0.0
        %911 = vmatprep.subr.mxu0 0.0
        %912 = vmatpush1.xpose.msra.mxu0 0.0
        %913 = vmatprep.subr.mxu0 0.0
        %914 = vmatpush1.xpose.msra.mxu0 0.0
        %915 = vmatprep.subr.mxu0 0.0
        %916 = vmatpush1.xpose.msra.mxu0 0.0
        %917 = vmatprep.subr.mxu0 0.0
        %918 = vmatpush1.xpose.msra.mxu0 0.0
        %919 = vmatprep.subr.mxu0 0.0
        %920 = vmatpush1.xpose.msra.mxu0 0.0
        %921 = vmatprep.subr.mxu0 0.0
        %922 = vmatpush1.xpose.msra.mxu0 0.0
        %923 = vmatprep.subr.mxu0 0.0
        %924 = vmatpush1.xpose.msra.mxu0 0.0
        %925 = vmatprep.subr.mxu0 0.0
        %926 = vmatpush1.xpose.msra.mxu0 0.0
        %927 = vmatprep.subr.mxu0 0.0
        %928 = vmatpush1.xpose.msra.mxu0 0.0
        %929 = vmatprep.subr.mxu0 0.0
        %930 = vmatpush1.xpose.msra.mxu0 0.0
        %931 = vmatprep.subr.mxu0 0.0
        %932 = vmatpush1.xpose.msra.mxu0 0.0
        %933 = vmatprep.subr.mxu0 0.0
        %934 = vmatpush1.xpose.msra.mxu0 0.0
        %935 = vmatprep.subr.mxu0 0.0
        %936 = vmatpush1.xpose.msra.mxu0 0.0
        %937 = vmatprep.subr.mxu0 0.0
        %938 = vmatpush1.xpose.msra.mxu0 0.0
        %939 = vmatprep.subr.mxu0 0.0
        %940 = vmatpush1.xpose.msra.mxu0 0.0
        %941 = vmatprep.mubr.f32.mxu0 0.0
        %942 = vmatmul.mubr.f32.gmra.mrb[0].mxu0 %v873
        %v943 = vpop.f32.mrb[0].mxu0
        %v944 = vadd.f32 0.0, %v943
        %v945 = vpop.f32.mrb[0].mxu0
        %946 = vdwg.mxu0
        %v947 = vsel %vm363, %v944, -1e+30
        %v948 = vsel %vm448, %v947, -inf
        %949 = vmax.xlane.f32.xlu0 %v948
        %v950 = vpop.xlane.xlu0 %949
        %v951 = vsub.f32 %v947, %v950
        %v952 = vmul.f32 %v951, 1.442695
        %v953 = vpow.pop %v952
        %v954 = vsel %vm448, %v953, 0.0
        %955 = vadd.xlane.f32.xlu0 %v954
        %v956 = vpop.xlane.xlu0 %955
        %v957 = vrcp.pop %v956
        %v958 = vmul.f32 %v953, %v957
        %959 = vrot.lane.b32.xlu0 %v356, 32
        %v960 = vpop.permute.xlu0 %959
        %v963 = vsel %vm448, %v958, 0
        %965 = vmatprep.subr.mxu0 0.0
        %966 = vmatpush1.msra.mxu0 %v960
        %967 = vmatprep.subr.mxu0 0.0
        %968 = vmatpush1.msra.mxu0 0.0
        %969 = vmatprep.subr.mxu0 0.0
        %970 = vmatpush1.msra.mxu0 0.0
        %971 = vmatprep.subr.mxu0 0.0
        %972 = vmatpush1.msra.mxu0 0.0
        %973 = vmatprep.subr.mxu0 0.0
        %974 = vmatpush1.msra.mxu0 0.0
        %975 = vmatprep.subr.mxu0 0.0
        %976 = vmatpush1.msra.mxu0 0.0
        %977 = vmatprep.subr.mxu0 0.0
        %978 = vmatpush1.msra.mxu0 0.0
        %979 = vmatprep.subr.mxu0 0.0
        %980 = vmatpush1.msra.mxu0 0.0
        %981 = vmatprep.subr.mxu0 0.0
        %982 = vmatpush1.msra.mxu0 0.0
        %983 = vmatprep.subr.mxu0 0.0
        %984 = vmatpush1.msra.mxu0 0.0
        %985 = vmatprep.subr.mxu0 0.0
        %986 = vmatpush1.msra.mxu0 0.0
        %987 = vmatprep.subr.mxu0 0.0
        %988 = vmatpush1.msra.mxu0 0.0
        %989 = vmatprep.subr.mxu0 0.0
        %990 = vmatpush1.msra.mxu0 0.0
        %991 = vmatprep.subr.mxu0 0.0
        %992 = vmatpush1.msra.mxu0 0.0
        %993 = vmatprep.subr.mxu0 0.0
        %994 = vmatpush1.msra.mxu0 0.0
        %995 = vmatprep.subr.mxu0 0.0
        %996 = vmatpush1.msra.mxu0 0.0
        %997 = vmatprep.subr.mxu0 0.0
        %998 = vmatpush1.msra.mxu0 0.0
        %999 = vmatprep.subr.mxu0 0.0
        %1000 = vmatpush1.msra.mxu0 0.0
        %1001 = vmatprep.subr.mxu0 0.0
        %1002 = vmatpush1.msra.mxu0 0.0
        %1003 = vmatprep.subr.mxu0 0.0
        %1004 = vmatpush1.msra.mxu0 0.0
        %1005 = vmatprep.subr.mxu0 0.0
        %1006 = vmatpush1.msra.mxu0 0.0
        %1007 = vmatprep.subr.mxu0 0.0
        %1008 = vmatpush1.msra.mxu0 0.0
        %1009 = vmatprep.subr.mxu0 0.0
        %1010 = vmatpush1.msra.mxu0 0.0
        %1011 = vmatprep.subr.mxu0 0.0
        %1012 = vmatpush1.msra.mxu0 0.0
        %1013 = vmatprep.subr.mxu0 0.0
        %1014 = vmatpush1.msra.mxu0 0.0
        %1015 = vmatprep.subr.mxu0 0.0
        %1016 = vmatpush1.msra.mxu0 0.0
        %1017 = vmatprep.subr.mxu0 0.0
        %1018 = vmatpush1.msra.mxu0 0.0
        %1019 = vmatprep.subr.mxu0 0.0
        %1020 = vmatpush1.msra.mxu0 0.0
        %1021 = vmatprep.subr.mxu0 0.0
        %1022 = vmatpush1.msra.mxu0 0.0
        %1023 = vmatprep.subr.mxu0 0.0
        %1024 = vmatpush1.msra.mxu0 0.0
        %1025 = vmatprep.subr.mxu0 0.0
        %1026 = vmatpush1.msra.mxu0 0.0
        %1027 = vmatprep.subr.mxu0 0.0
        %1028 = vmatpush1.msra.mxu0 0.0
        %1029 = vmatprep.mubr.f32.mxu0 0.0
        %1030 = vmatmul.mubr.f32.gmra.mrb[0].mxu0 %v963
        %v1031 = vpop.f32.mrb[0].mxu0
        %v1032 = vadd.f32 0.0, %v1031
        %v1033 = vpop.f32.mrb[0].mxu0
        %1034 = vdwg.mxu0
        %v1035 = vadd.f32 %v868, %v1032
        %1036 = vst.msk [vmem:[%s200] sm:$0xff] %vm214, %v1035
        %s1037 = sand.u32 %s97, 1
        %s1038 = scalar_lea.sflag [#allocation4], %s1037
        %s1039 = sand.u32 %s97, 1
        %s1040 = smul.addr %s1039, 8
        %s1041 = scalar_lea.vmem [#allocation7], %s1040
        // Predicated region
        $region41: #{tpu_custom_call.1} parent=31 // pred_check
          %p1042 = pneg %p107
        $region42: #{tpu_custom_call.1} parent=31 // pred_check_branch
          %1044 = sbr.rel (%p1042) target = $region44
        $region43: #{tpu_custom_call.1} parent=31 // pred_region
          %s1046 = ssub.s32 128, 128
          %1047 = vsyncadd %s1038, %s1046
          %s1048 = smul.addr %s21, 128
          %s1049 = scalar_lea.hbm %s3, %s1048
          %s1051 = sshll.u32 %s1041, 4
          %s1052 = int_to_ptr.vmem [resolvable:$true] %s1051
          %1054 = dma.vmem_to_hbm [thread:$0]  %s1052, 128, %s1049, %s1038
        $region44: #{tpu_custom_call.1} parent=31 // pred_fallthru
          _
      $region32: #{tpu_custom_call.1} parent=5 // pred_fallthru
        _
      %p1055 = scmp.le.s32.totalorder 2, %s16
      // Predicated region
      $region45: #{tpu_custom_call.1} parent=5 // pred_check
        %p1056 = pneg %p1055
      $region46: #{tpu_custom_call.1} parent=5 // pred_check_branch
        %1058 = sbr.rel (%p1056) target = $region48
      $region47: #{tpu_custom_call.1} parent=5 // pred_region
        %s1059 = ssub.s32 %s16, 2
        // Predicated region
        $region49: #{tpu_custom_call.1} parent=47 // pred_check
          %p1060 = pneg %p113
        $region50: #{tpu_custom_call.1} parent=47 // pred_check_branch
          %1062 = sbr.rel (%p1060) target = $region52
        $region51: #{tpu_custom_call.1} parent=47 // pred_region
          %s1063 = sand.u32 %s98, 1
          %s1064 = scalar_lea.sflag [#allocation4], %s1063
          %s1065 = sand.u32 %s98, 1
          %s1066 = smul.addr %s1065, 8
          %s1067 = scalar_lea.vmem [#allocation7], %s1066
          %1068 = dma.done %s1064, 128
        $region52: #{tpu_custom_call.1} parent=47 // pred_fallthru
          _
      $region48: #{tpu_custom_call.1} parent=5 // pred_fallthru
        _
    $region6: #{tpu_custom_call.1} parent=1 // loop_footer
      %s20 = sadd.s32 1, %s16
    $region7: #{tpu_custom_call.1} parent=1 // loop_footer_branch
      %15 = sbr.rel target = $region3
    $region8: #{tpu_custom_call.1} parent=1 // loop_exit
      _
    %1069 = vsyncpa [#allocation3], 1
    %s1070 = scalar_lea.sflag [#allocation3], 1
    %1071 = vsyncpa %s1070, 1
    %1072 = vsyncpa [#allocation6], 1
    %1073 = vsyncpa [#allocation4], 1
    %s1074 = scalar_lea.sflag [#allocation4], 1
    %1075 = vsyncpa %s1074, 1

</llo_original>
